<compile_context>
chip_gen: v7x
topology: tpu7x:2x2x1
jax: 0.10.0
libtpu: 0.0.40
codegen_flags: <defaults>
</compile_context>

<pallas_src>
import jax
import jax.numpy as jnp
from jax import lax
from jax.experimental import pallas as pl
from jax.experimental.pallas import tpu as pltpu


_LANE_CHUNK = 1024            # inner lane chunk for masked boundary tiles
_HEADROOM = 2 * 1024 * 1024   # VMEM slack left for Mosaic internal scratch


def _cdiv(a, b):
    return -(-a // b)


def _round_up(a, m):
    return _cdiv(a, m) * m


# ----------------------------------------------------------------------------
# Shift plan (mirrors the PyTorch tsm() exactly, zero temporal padding).
# ----------------------------------------------------------------------------
def _shift_plan(fold, blending_frames):
    if blending_frames == 3:
        plan = [(+1, 0, fold), (-1, fold, 2 * fold)]
        rest_start = 2 * fold
    elif blending_frames == 5:
        plan = [(+2, 0, fold), (+1, fold, 2 * fold),
                (-2, 2 * fold, 3 * fold), (-1, 3 * fold, 4 * fold)]
        rest_start = 4 * fold
    elif blending_frames == 7:
        plan = [(+3, 0, fold), (+2, fold, 2 * fold), (+1, 2 * fold, 3 * fold),
                (-3, 3 * fold, 4 * fold), (-2, 4 * fold, 5 * fold),
                (-1, 5 * fold, 6 * fold)]
        rest_start = 6 * fold
    else:
        raise ValueError('Blending more than 7 frames is not supported yet!')
    plan = [(s, lo, hi) for (s, lo, hi) in plan if hi > lo]
    return plan, rest_start


def _sublane_pack(dtype):
    # f32 -> 8, bf16 -> 16, int8/fp8 -> 32 rows per native sublane tile.
    return max(8, 32 // jnp.dtype(dtype).itemsize)


def _vmem_budget():
    """(max_block_bytes, vmem_limit_bytes), generation aware."""
    cap = None
    try:
        cap = int(pltpu.get_tpu_info().vmem_capacity_bytes)
    except Exception:
        cap = None
    if cap is not None and cap >= 100 * 1024 * 1024:
        # v5e / v6e class: 128 MiB physical VMEM.
        return 10 * 1024 * 1024, 56 * 1024 * 1024
    # v7x class (64 MiB physical VMEM) or unknown: stay conservative.
    return 6 * 1024 * 1024, 40 * 1024 * 1024


def _choose_hw_tile(col_bytes, hw, max_block_bytes):
    """Lane tile for the (C, hw) layout: a multiple of 128 (<= hw) or the full
    hw, sized to keep a block within max_block_bytes and balanced so the last
    block wastes as few lanes as possible."""
    if hw <= 128:
        return hw
    budget = max(128, (max_block_bytes // max(1, col_bytes)) // 128 * 128)
    if budget >= hw:
        return hw
    n_blocks = _cdiv(hw, budget)
    tile = _round_up(_cdiv(hw, n_blocks), 128)
    tile = min(tile, (hw // 128) * 128)
    return max(128, int(tile))


# ----------------------------------------------------------------------------
# Region partition: aligned copy segments + boundary-straddling mixed tiles.
# ----------------------------------------------------------------------------
def _partition(regions, extent, quantum):
    """regions: disjoint contiguous (shift, lo, hi) covering [0, extent).
    Returns (segments, mixed):
      segments : (shift, start, end) aligned ranges inside a single region
      mixed    : (start, end, [intersecting regions]) quantum-sized tiles."""
    segments = []
    mixed = []
    cur_region = None
    cur_start = None

    def flush(end):
        nonlocal cur_region, cur_start
        if cur_region is not None:
            segments.append((cur_region[0], cur_start, end))
            cur_region, cur_start = None, None

    a = 0
    while a < extent:
        b = min(a + quantum, extent)
        inter = [r for r in regions if (r[1] < b) and (r[2] > a)]
        if len(inter) == 1:
            r = inter[0]
            if cur_region is not r:
                flush(a)
                cur_region, cur_start = r, a
        else:
            flush(a)
            mixed.append((a, b, inter))
        a = b
    flush(extent)
    return segments, mixed


# ----------------------------------------------------------------------------
# Kernel bodies.
# ----------------------------------------------------------------------------
def _make_kernel_chw(T, segments, mixed):
    """(1, T, C, hw_tile) blocks: slice copies + narrow masked boundary tiles."""

    def kernel(x_ref, o_ref):
        hw_blk = o_ref.shape[-1]
        dtype = o_ref.dtype

        # Aligned copy segments: pure vld/vst with a temporal offset.
        for shift, lo, hi in segments:
            g = hi - lo
            s = min(abs(shift), T)
            keep = T - s
            if shift == 0:
                o_ref[0, :, lo:hi, :] = x_ref[0, :, lo:hi, :]
            elif shift > 0:
                if keep > 0:
                    o_ref[0, 0:keep, lo:hi, :] = x_ref[0, s:T, lo:hi, :]
                o_ref[0, keep:T, lo:hi, :] = jnp.zeros((s, g, hw_blk), dtype)
            else:
                if keep > 0:
                    o_ref[0, s:T, lo:hi, :] = x_ref[0, 0:keep, lo:hi, :]
                o_ref[0, 0:s, lo:hi, :] = jnp.zeros((s, g, hw_blk), dtype)

        # Boundary sublane tiles: masked combine over a narrow (rows, chunk)
        # slab only; the lane axis is chunked to bound vreg pressure.
        for a, b, regs in mixed:
            rows = b - a
            ch = lax.broadcasted_iota(jnp.int32, (rows, 1), 0) + a
            masks = [(ch >= lo) & (ch < hi) for (_, lo, hi) in regs]
            for t in range(T):
                for w0 in range(0, hw_blk, _LANE_CHUNK):
                    w1 = min(w0 + _LANE_CHUNK, hw_blk)
                    val = jnp.zeros((rows, w1 - w0), dtype)
                    for (shift, _lo, _hi), m in zip(regs, masks):
                        src = t + shift
                        if 0 <= src < T:
                            val = jnp.where(m, x_ref[0, src, a:b, w0:w1], val)
                    o_ref[0, t, a:b, w0:w1] = val

    return kernel


def _make_kernel_flat(T, segments, mixed):
    """(1, T, C*hw) blocks: lane-dense stores; 128-lane alignment quantum."""

    def kernel(x_ref, o_ref):
        dtype = o_ref.dtype

        for shift, lo, hi in segments:
            gl = hi - lo
            s = min(abs(shift), T)
            keep = T - s
            if shift == 0:
                o_ref[0, :, lo:hi] = x_ref[0, :, lo:hi]
            elif shift > 0:
                if keep > 0:
                    o_ref[0, 0:keep, lo:hi] = x_ref[0, s:T, lo:hi]
                o_ref[0, keep:T, lo:hi] = jnp.zeros((s, gl), dtype)
            else:
                if keep > 0:
                    o_ref[0, s:T, lo:hi] = x_ref[0, 0:keep, lo:hi]
                o_ref[0, 0:s, lo:hi] = jnp.zeros((s, gl), dtype)

        for a, b, regs in mixed:
            width = b - a
            lane = lax.broadcasted_iota(jnp.int32, (1, width), 1) + a
            masks = [(lane >= lo) & (lane < hi) for (_, lo, hi) in regs]
            for t in range(T):
                val = jnp.zeros((1, width), dtype)
                for (shift, _lo, _hi), m in zip(regs, masks):
                    src = t + shift
                    if 0 <= src < T:
                        val = jnp.where(m, x_ref[0, src:src + 1, a:b], val)
                o_ref[0, t:t + 1, a:b] = val

    return kernel


def _make_kernel_generic(T, regions, c_tile):
    """Channel-tiled fallback: dynamic channel masks (block may start at any
    pack-aligned channel offset).  Only used for very large T*C."""

    def kernel(x_ref, o_ref):
        hw_blk = o_ref.shape[-1]
        dtype = o_ref.dtype
        c0 = pl.program_id(1) * c_tile
        ch = lax.broadcasted_iota(jnp.int32, (c_tile, 1), 0) + c0
        masks = [(ch >= lo) & (ch < hi) for (_, lo, hi) in regions]
        for t in range(T):
            val = jnp.zeros((c_tile, hw_blk), dtype)
            for (shift, _lo, _hi), m in zip(regions, masks):
                src = t + shift
                if 0 <= src < T:
                    val = jnp.where(m, x_ref[0, src], val)
            o_ref[0, t] = val

    return kernel


# ----------------------------------------------------------------------------
# Wrapper.
# ----------------------------------------------------------------------------
def tsm_pallas(x, duration, blending_frames=3, fold_div=8,
               _force_path=None, _max_block_bytes=None):
    """Pallas implementation of tsm(): x is NCHW with nt = n_batch * duration."""
    nt, c, h, w = x.shape
    assert nt % duration == 0, "nt must be divisible by duration"
    n_batch = nt // duration
    T = duration
    fold = c // fold_div
    hw = h * w
    itemsize = jnp.dtype(x.dtype).itemsize
    pack = _sublane_pack(x.dtype)

    groups, rest_start = _shift_plan(fold, blending_frames)
    regions = [g for g in groups]
    if rest_start < c:
        regions.append((0, rest_start, c))
    regions = [r for r in regions if r[2] > r[1]]

    max_block, vmem_limit = _vmem_budget()
    if _max_block_bytes is not None:
        max_block = int(_max_block_bytes)

    flat_block_bytes = T * c * hw * itemsize

    # ---- path selection --------------------------------------------------
    path = _force_path
    if path is None:
        lane_dense_win = (hw % 128 != 0)
        flat_fits = (4 * flat_block_bytes + _HEADROOM <= vmem_limit)
        # keep >=2 grid programs (megacore) when batch is 1 and hw is splittable
        prefer_split = (n_batch == 1 and hw >= 256)
        path = "flat" if (lane_dense_win and flat_fits and not prefer_split) else "chw"

    hw_tile = None
    if path == "chw":
        col_bytes = T * c * itemsize
        segments, mixed = _partition(regions, c, pack)
        hw_tile = _choose_hw_tile(col_bytes, hw, max_block)
        if mixed and hw > 128:
            hw_tile = min(hw_tile, 4096)          # bound masked-slab vreg usage
        nb = _cdiv(hw, hw_tile)
        # Megacore: make sure several programs exist on the parallel axes.
        if hw > 128 and n_batch * nb < 4:
            want = min(_cdiv(hw, 128), _cdiv(4, n_batch))
            if want > nb:
                hw_tile = max(128, _round_up(_cdiv(hw, want), 128))
                nb = _cdiv(hw, hw_tile)
        block_bytes = col_bytes * hw_tile
        if (4 * block_bytes + _HEADROOM > vmem_limit) and _force_path is None:
            path = "generic"                      # huge T*C: channel-tiled fallback

    # ---- build pallas_call -------------------------------------------------
    if path == "flat":
        lane_regions = [(s, lo * hw, hi * hw) for (s, lo, hi) in regions]
        segments, mixed = _partition(lane_regions, c * hw, 128)
        kernel = _make_kernel_flat(T, segments, mixed)
        xr = x.reshape(n_batch, T, c * hw)
        grid = (n_batch,)
        in_specs = [pl.BlockSpec((1, T, c * hw), lambda b: (b, 0, 0))]
        out_specs = pl.BlockSpec((1, T, c * hw), lambda b: (b, 0, 0))
        out_shape = jax.ShapeDtypeStruct((n_batch, T, c * hw), x.dtype)
        dims = ("parallel",)
    elif path == "chw":
        kernel = _make_kernel_chw(T, segments, mixed)
        xr = x.reshape(n_batch, T, c, hw)
        grid = (n_batch, _cdiv(hw, hw_tile))
        in_specs = [pl.BlockSpec((1, T, c, hw_tile), lambda b, j: (b, 0, 0, j))]
        out_specs = pl.BlockSpec((1, T, c, hw_tile), lambda b, j: (b, 0, 0, j))
        out_shape = jax.ShapeDtypeStruct((n_batch, T, c, hw), x.dtype)
        dims = ("parallel", "parallel")
    else:  # "generic"
        hw_tile_c = hw if hw <= 128 else 128
        bytes_per_row = T * hw_tile_c * itemsize
        rows_budget = max(pack, (max_block // max(1, bytes_per_row)) // pack * pack)
        rows_vreg = max(pack, (64 * 1024 // max(1, hw_tile_c * itemsize)) // pack * pack)
        c_cap = (c // pack) * pack if c >= pack else c
        c_tile = max(min(rows_budget, rows_vreg, c_cap), min(pack, c))
        kernel = _make_kernel_generic(T, regions, c_tile)
        xr = x.reshape(n_batch, T, c, hw)
        grid = (n_batch, _cdiv(c, c_tile), _cdiv(hw, hw_tile_c))
        in_specs = [pl.BlockSpec((1, T, c_tile, hw_tile_c),
                                 lambda b, ci, j: (b, 0, ci, j))]
        out_specs = pl.BlockSpec((1, T, c_tile, hw_tile_c),
                                 lambda b, ci, j: (b, 0, ci, j))
        out_shape = jax.ShapeDtypeStruct((n_batch, T, c, hw), x.dtype)
        dims = ("parallel", "parallel", "parallel")

    out = pl.pallas_call(
        kernel,
        out_shape=out_shape,
        grid_spec=pltpu.PrefetchScalarGridSpec(
            num_scalar_prefetch=0,
            grid=grid,
            in_specs=in_specs,
            out_specs=out_specs,
        ),
        compiler_params=pltpu.CompilerParams(
            dimension_semantics=dims,
            vmem_limit_bytes=vmem_limit,
        ),
        cost_estimate=pl.CostEstimate(
            flops=0,
            transcendentals=0,
            bytes_accessed=2 * x.size * itemsize),
    )(xr)
    return out.reshape(nt, c, h, w)


class TSMModule:
    """JAX/Pallas equivalent of the PyTorch TSMModule (no parameters)."""

    def __init__(self, duration, blending_frames=3):
        self.duration = duration
        self.blending_frames = blending_frames
        self.fold_div = 8
        self._call = jax.jit(
            lambda x: tsm_pallas(x, duration, blending_frames, 8))

    def __call__(self, x):
        return self._call(x)

    def name(self):
        return 'TSM-b{}'.format(self.blending_frames)


# ----------------------------------------------------------------------------
# Pure-JAX reference (mirrors the PyTorch tsm() exactly).
# ----------------------------------------------------------------------------
def tsm_reference(x, duration, blending_frames=3, fold_div=8):
    nt, c, h, w = x.shape
    n_batch = nt // duration
    xr = x.reshape(n_batch, duration, c, h, w)
    out = jnp.zeros_like(xr)
    fold = c // fold_div
    if blending_frames == 3:
        out = out.at[:, :-1, :fold].set(xr[:, 1:, :fold])
        out = out.at[:, 1:, fold:2 * fold].set(xr[:, :-1, fold:2 * fold])
        out = out.at[:, :, 2 * fold:].set(xr[:, :, 2 * fold:])
    elif blending_frames == 5:
        out = out.at[:, :-2, :fold].set(xr[:, 2:, :fold])
        out = out.at[:, :-1, fold:2 * fold].set(xr[:, 1:, fold:2 * fold])
        out = out.at[:, 2:, 2 * fold:3 * fold].set(xr[:, :-2, 2 * fold:3 * fold])
        out = out.at[:, 1:, 3 * fold:4 * fold].set(xr[:, :-1, 3 * fold:4 * fold])
        out = out.at[:, :, 4 * fold:].set(xr[:, :, 4 * fold:])
    elif blending_frames == 7:
        out = out.at[:, :-3, :fold].set(xr[:, 3:, :fold])
        out = out.at[:, :-2, fold:2 * fold].set(xr[:, 2:, fold:2 * fold])
        out = out.at[:, :-1, 2 * fold:3 * fold].set(xr[:, 1:, 2 * fold:3 * fold])
        out = out.at[:, 3:, 3 * fold:4 * fold].set(xr[:, :-3, 3 * fold:4 * fold])
        out = out.at[:, 2:, 4 * fold:5 * fold].set(xr[:, :-2, 4 * fold:5 * fold])
        out = out.at[:, 1:, 5 * fold:6 * fold].set(xr[:, :-1, 5 * fold:6 * fold])
        out = out.at[:, :, 6 * fold:].set(xr[:, :, 6 * fold:])
    else:
        raise ValueError('Blending more than 7 frames is not supported yet!')
    return out.reshape(nt, c, h, w)


if __name__ == "__main__":
    import numpy as np

    keys = jax.random.split(jax.random.PRNGKey(0), 8)
    n_batch, duration = 2, 4
    nt = n_batch * duration

    def check(x, blending, **kw):
        if kw:
            y = tsm_pallas(x, duration, blending_frames=blending, **kw)
        else:
            mod = TSMModule(duration=duration, blending_frames=blending)
            y = mod(x)
        y = jax.block_until_ready(y)
        y_ref = tsm_reference(x, duration, blending_frames=blending)
        np.testing.assert_array_equal(np.asarray(y), np.asarray(y_ref))
        assert y.shape == x.shape and y.dtype == x.dtype

    # 1) c=16 f32 (fold=2, sublane-misaligned): hybrid "chw" path with masked
    #    boundary tiles; all supported blending factors.
    x = jax.random.normal(keys[0], (nt, 16, 16, 16), dtype=jnp.float32)
    for blending in (3, 5, 7):
        check(x, blending)

    # 2) c=64 f32 (fold=8, aligned): pure slice-copy "chw" path.
    x = jax.random.normal(keys[1], (nt, 64, 16, 16), dtype=jnp.float32)
    check(x, 3)

    # 3) c=64 f32, 7x7 spatial (hw=49): lane-dense "flat" path.
    x = jax.random.normal(keys[2], (nt, 64, 7, 7), dtype=jnp.float32)
    check(x, 3)

    # 4) bf16 c=64 (fold=8, pack=16): hybrid path, one masked boundary tile.
    x = jax.random.normal(keys[3], (nt, 64, 16, 16), dtype=jnp.bfloat16)
    check(x, 3)

    # 5) 12x12 spatial (hw=144), forced "chw": exercises a partial lane block
    #    and the megacore lane split.
    x = jax.random.normal(keys[4], (nt, 64, 12, 12), dtype=jnp.float32)
    check(x, 3, _force_path="chw")

    # 6) Forced channel-tiled generic fallback (partial channel block,
    #    unaligned group boundaries, dynamic channel masks).
    x = jax.random.normal(keys[5], (nt, 48, 16, 16), dtype=jnp.float32)
    check(x, 3, _force_path="generic", _max_block_bytes=64 * 1024)

    print("KERNEL_OK")
</pallas_src>

<mosaic_0001>
module attributes {stable_mosaic.version = 11 : i64} {
  func.func @kernel(%arg0: i32, %arg1: i32, %arg2: memref<1x4x16x128xf32, #tpu.memory_space<vmem>>, %arg3: memref<1x4x16x128xf32, #tpu.memory_space<vmem>>) attributes {dimension_semantics = [#tpu.dimension_semantics<parallel>, #tpu.dimension_semantics<parallel>], iteration_bounds = array<i64: 2, 2>, scalar_prefetch = 0 : i64, scratch_operands = 0 : i64, tpu.core_type = #tpu.core_type<tc>, window_params = [{transform_indices = @transform_0, window_bounds = array<i64: 1, 4, 16, 128>}, {transform_indices = @transform_1, window_bounds = array<i64: 1, 4, 16, 128>}]} {
    %c0 = arith.constant 0 : index
    %c0_0 = arith.constant 0 : index
    %c8 = arith.constant 8 : index
    %c0_1 = arith.constant 0 : index
    %0 = vector.load %arg2[%c0, %c0_0, %c8, %c0_1] : memref<1x4x16x128xf32, #tpu.memory_space<vmem>>, vector<1x4x8x128xf32>
    %1 = vector.shape_cast %0 : vector<1x4x8x128xf32> to vector<4x8x128xf32>
    %c0_2 = arith.constant 0 : index
    %c0_3 = arith.constant 0 : index
    %c8_4 = arith.constant 8 : index
    %c0_5 = arith.constant 0 : index
    %2 = vector.load %arg3[%c0_2, %c0_3, %c8_4, %c0_5] : memref<1x4x16x128xf32, #tpu.memory_space<vmem>>, vector<1x4x8x128xf32>
    %3 = vector.shape_cast %2 : vector<1x4x8x128xf32> to vector<4x8x128xf32>
    %4 = vector.shape_cast %1 : vector<4x8x128xf32> to vector<1x4x8x128xf32>
    tpu.vector_store %arg3[%c0_2, %c0_3, %c8_4, %c0_5], %4 {strides = array<i32>} : memref<1x4x16x128xf32, #tpu.memory_space<vmem>>, vector<1x4x8x128xf32>,
    %5 = tpu.iota {dimensions = array<i32: 0>} : vector<8x1xi32>
    %c0_i32 = arith.constant 0 : i32
    %6 = vector.broadcast %c0_i32 : i32 to vector<8x1xi32>
    %7 = arith.addi %5, %6 : vector<8x1xi32>
    %c0_i32_6 = arith.constant 0 : i32
    %8 = vector.broadcast %c0_i32_6 : i32 to vector<8x1xi32>
    %9 = arith.cmpi sge, %7, %8 : vector<8x1xi32>
    %c2_i32 = arith.constant 2 : i32
    %10 = vector.broadcast %c2_i32 : i32 to vector<8x1xi32>
    %11 = arith.cmpi slt, %7, %10 : vector<8x1xi32>
    %12 = arith.andi %9, %11 : vector<8x1xi1>
    %c2_i32_7 = arith.constant 2 : i32
    %13 = vector.broadcast %c2_i32_7 : i32 to vector<8x1xi32>
    %14 = arith.cmpi sge, %7, %13 : vector<8x1xi32>
    %c4_i32 = arith.constant 4 : i32
    %15 = vector.broadcast %c4_i32 : i32 to vector<8x1xi32>
    %16 = arith.cmpi slt, %7, %15 : vector<8x1xi32>
    %17 = arith.andi %14, %16 : vector<8x1xi1>
    %c4_i32_8 = arith.constant 4 : i32
    %18 = vector.broadcast %c4_i32_8 : i32 to vector<8x1xi32>
    %19 = arith.cmpi sge, %7, %18 : vector<8x1xi32>
    %c16_i32 = arith.constant 16 : i32
    %20 = vector.broadcast %c16_i32 : i32 to vector<8x1xi32>
    %21 = arith.cmpi slt, %7, %20 : vector<8x1xi32>
    %22 = arith.andi %19, %21 : vector<8x1xi1>
    %cst = arith.constant 0.000000e+00 : f32
    %23 = vector.broadcast %cst : f32 to vector<8x128xf32>
    %c0_9 = arith.constant 0 : index
    %c1 = arith.constant 1 : index
    %c0_10 = arith.constant 0 : index
    %c0_11 = arith.constant 0 : index
    %24 = vector.load %arg2[%c0_9, %c1, %c0_10, %c0_11] : memref<1x4x16x128xf32, #tpu.memory_space<vmem>>, vector<1x1x8x128xf32>
    %25 = vector.shape_cast %24 : vector<1x1x8x128xf32> to vector<8x128xf32>
    %26 = vector.shape_cast %12 : vector<8x1xi1> to vector<8x1xi1>
    %27 = vector.broadcast %26 : vector<8x1xi1> to vector<8x128xi1>
    %28 = arith.select %27, %25, %23 : vector<8x128xi1>, vector<8x128xf32>
    %c0_12 = arith.constant 0 : index
    %c0_13 = arith.constant 0 : index
    %c0_14 = arith.constant 0 : index
    %c0_15 = arith.constant 0 : index
    %29 = vector.load %arg2[%c0_12, %c0_13, %c0_14, %c0_15] : memref<1x4x16x128xf32, #tpu.memory_space<vmem>>, vector<1x1x8x128xf32>
    %30 = vector.shape_cast %29 : vector<1x1x8x128xf32> to vector<8x128xf32>
    %31 = vector.shape_cast %22 : vector<8x1xi1> to vector<8x1xi1>
    %32 = vector.broadcast %31 : vector<8x1xi1> to vector<8x128xi1>
    %33 = arith.select %32, %30, %28 : vector<8x128xi1>, vector<8x128xf32>
    %c0_16 = arith.constant 0 : index
    %c0_17 = arith.constant 0 : index
    %c0_18 = arith.constant 0 : index
    %c0_19 = arith.constant 0 : index
    %34 = vector.load %arg3[%c0_16, %c0_17, %c0_18, %c0_19] : memref<1x4x16x128xf32, #tpu.memory_space<vmem>>, vector<1x1x8x128xf32>
    %35 = vector.shape_cast %34 : vector<1x1x8x128xf32> to vector<8x128xf32>
    %36 = vector.shape_cast %33 : vector<8x128xf32> to vector<1x1x8x128xf32>
    tpu.vector_store %arg3[%c0_16, %c0_17, %c0_18, %c0_19], %36 {strides = array<i32>} : memref<1x4x16x128xf32, #tpu.memory_space<vmem>>, vector<1x1x8x128xf32>,
    %cst_20 = arith.constant 0.000000e+00 : f32
    %37 = vector.broadcast %cst_20 : f32 to vector<8x128xf32>
    %c0_21 = arith.constant 0 : index
    %c2 = arith.constant 2 : index
    %c0_22 = arith.constant 0 : index
    %c0_23 = arith.constant 0 : index
    %38 = vector.load %arg2[%c0_21, %c2, %c0_22, %c0_23] : memref<1x4x16x128xf32, #tpu.memory_space<vmem>>, vector<1x1x8x128xf32>
    %39 = vector.shape_cast %38 : vector<1x1x8x128xf32> to vector<8x128xf32>
    %40 = vector.shape_cast %12 : vector<8x1xi1> to vector<8x1xi1>
    %41 = vector.broadcast %40 : vector<8x1xi1> to vector<8x128xi1>
    %42 = arith.select %41, %39, %37 : vector<8x128xi1>, vector<8x128xf32>
    %c0_24 = arith.constant 0 : index
    %c0_25 = arith.constant 0 : index
    %c0_26 = arith.constant 0 : index
    %c0_27 = arith.constant 0 : index
    %43 = vector.load %arg2[%c0_24, %c0_25, %c0_26, %c0_27] : memref<1x4x16x128xf32, #tpu.memory_space<vmem>>, vector<1x1x8x128xf32>
    %44 = vector.shape_cast %43 : vector<1x1x8x128xf32> to vector<8x128xf32>
    %45 = vector.shape_cast %17 : vector<8x1xi1> to vector<8x1xi1>
    %46 = vector.broadcast %45 : vector<8x1xi1> to vector<8x128xi1>
    %47 = arith.select %46, %44, %42 : vector<8x128xi1>, vector<8x128xf32>
    %c0_28 = arith.constant 0 : index
    %c1_29 = arith.constant 1 : index
    %c0_30 = arith.constant 0 : index
    %c0_31 = arith.constant 0 : index
    %48 = vector.load %arg2[%c0_28, %c1_29, %c0_30, %c0_31] : memref<1x4x16x128xf32, #tpu.memory_space<vmem>>, vector<1x1x8x128xf32>
    %49 = vector.shape_cast %48 : vector<1x1x8x128xf32> to vector<8x128xf32>
    %50 = vector.shape_cast %22 : vector<8x1xi1> to vector<8x1xi1>
    %51 = vector.broadcast %50 : vector<8x1xi1> to vector<8x128xi1>
    %52 = arith.select %51, %49, %47 : vector<8x128xi1>, vector<8x128xf32>
    %c0_32 = arith.constant 0 : index
    %c1_33 = arith.constant 1 : index
    %c0_34 = arith.constant 0 : index
    %c0_35 = arith.constant 0 : index
    %53 = vector.load %arg3[%c0_32, %c1_33, %c0_34, %c0_35] : memref<1x4x16x128xf32, #tpu.memory_space<vmem>>, vector<1x1x8x128xf32>
    %54 = vector.shape_cast %53 : vector<1x1x8x128xf32> to vector<8x128xf32>
    %55 = vector.shape_cast %52 : vector<8x128xf32> to vector<1x1x8x128xf32>
    tpu.vector_store %arg3[%c0_32, %c1_33, %c0_34, %c0_35], %55 {strides = array<i32>} : memref<1x4x16x128xf32, #tpu.memory_space<vmem>>, vector<1x1x8x128xf32>,
    %cst_36 = arith.constant 0.000000e+00 : f32
    %56 = vector.broadcast %cst_36 : f32 to vector<8x128xf32>
    %c0_37 = arith.constant 0 : index
    %c3 = arith.constant 3 : index
    %c0_38 = arith.constant 0 : index
    %c0_39 = arith.constant 0 : index
    %57 = vector.load %arg2[%c0_37, %c3, %c0_38, %c0_39] : memref<1x4x16x128xf32, #tpu.memory_space<vmem>>, vector<1x1x8x128xf32>
    %58 = vector.shape_cast %57 : vector<1x1x8x128xf32> to vector<8x128xf32>
    %59 = vector.shape_cast %12 : vector<8x1xi1> to vector<8x1xi1>
    %60 = vector.broadcast %59 : vector<8x1xi1> to vector<8x128xi1>
    %61 = arith.select %60, %58, %56 : vector<8x128xi1>, vector<8x128xf32>
    %c0_40 = arith.constant 0 : index
    %c1_41 = arith.constant 1 : index
    %c0_42 = arith.constant 0 : index
    %c0_43 = arith.constant 0 : index
    %62 = vector.load %arg2[%c0_40, %c1_41, %c0_42, %c0_43] : memref<1x4x16x128xf32, #tpu.memory_space<vmem>>, vector<1x1x8x128xf32>
    %63 = vector.shape_cast %62 : vector<1x1x8x128xf32> to vector<8x128xf32>
    %64 = vector.shape_cast %17 : vector<8x1xi1> to vector<8x1xi1>
    %65 = vector.broadcast %64 : vector<8x1xi1> to vector<8x128xi1>
    %66 = arith.select %65, %63, %61 : vector<8x128xi1>, vector<8x128xf32>
    %c0_44 = arith.constant 0 : index
    %c2_45 = arith.constant 2 : index
    %c0_46 = arith.constant 0 : index
    %c0_47 = arith.constant 0 : index
    %67 = vector.load %arg2[%c0_44, %c2_45, %c0_46, %c0_47] : memref<1x4x16x128xf32, #tpu.memory_space<vmem>>, vector<1x1x8x128xf32>
    %68 = vector.shape_cast %67 : vector<1x1x8x128xf32> to vector<8x128xf32>
    %69 = vector.shape_cast %22 : vector<8x1xi1> to vector<8x1xi1>
    %70 = vector.broadcast %69 : vector<8x1xi1> to vector<8x128xi1>
    %71 = arith.select %70, %68, %66 : vector<8x128xi1>, vector<8x128xf32>
    %c0_48 = arith.constant 0 : index
    %c2_49 = arith.constant 2 : index
    %c0_50 = arith.constant 0 : index
    %c0_51 = arith.constant 0 : index
    %72 = vector.load %arg3[%c0_48, %c2_49, %c0_50, %c0_51] : memref<1x4x16x128xf32, #tpu.memory_space<vmem>>, vector<1x1x8x128xf32>
    %73 = vector.shape_cast %72 : vector<1x1x8x128xf32> to vector<8x128xf32>
    %74 = vector.shape_cast %71 : vector<8x128xf32> to vector<1x1x8x128xf32>
    tpu.vector_store %arg3[%c0_48, %c2_49, %c0_50, %c0_51], %74 {strides = array<i32>} : memref<1x4x16x128xf32, #tpu.memory_space<vmem>>, vector<1x1x8x128xf32>,
    %cst_52 = arith.constant 0.000000e+00 : f32
    %75 = vector.broadcast %cst_52 : f32 to vector<8x128xf32>
    %c0_53 = arith.constant 0 : index
    %c2_54 = arith.constant 2 : index
    %c0_55 = arith.constant 0 : index
    %c0_56 = arith.constant 0 : index
    %76 = vector.load %arg2[%c0_53, %c2_54, %c0_55, %c0_56] : memref<1x4x16x128xf32, #tpu.memory_space<vmem>>, vector<1x1x8x128xf32>
    %77 = vector.shape_cast %76 : vector<1x1x8x128xf32> to vector<8x128xf32>
    %78 = vector.shape_cast %17 : vector<8x1xi1> to vector<8x1xi1>
    %79 = vector.broadcast %78 : vector<8x1xi1> to vector<8x128xi1>
    %80 = arith.select %79, %77, %75 : vector<8x128xi1>, vector<8x128xf32>
    %c0_57 = arith.constant 0 : index
    %c3_58 = arith.constant 3 : index
    %c0_59 = arith.constant 0 : index
    %c0_60 = arith.constant 0 : index
    %81 = vector.load %arg2[%c0_57, %c3_58, %c0_59, %c0_60] : memref<1x4x16x128xf32, #tpu.memory_space<vmem>>, vector<1x1x8x128xf32>
    %82 = vector.shape_cast %81 : vector<1x1x8x128xf32> to vector<8x128xf32>
    %83 = vector.shape_cast %22 : vector<8x1xi1> to vector<8x1xi1>
    %84 = vector.broadcast %83 : vector<8x1xi1> to vector<8x128xi1>
    %85 = arith.select %84, %82, %80 : vector<8x128xi1>, vector<8x128xf32>
    %c0_61 = arith.constant 0 : index
    %c3_62 = arith.constant 3 : index
    %c0_63 = arith.constant 0 : index
    %c0_64 = arith.constant 0 : index
    %86 = vector.load %arg3[%c0_61, %c3_62, %c0_63, %c0_64] : memref<1x4x16x128xf32, #tpu.memory_space<vmem>>, vector<1x1x8x128xf32>
    %87 = vector.shape_cast %86 : vector<1x1x8x128xf32> to vector<8x128xf32>
    %88 = vector.shape_cast %85 : vector<8x128xf32> to vector<1x1x8x128xf32>
    tpu.vector_store %arg3[%c0_61, %c3_62, %c0_63, %c0_64], %88 {strides = array<i32>} : memref<1x4x16x128xf32, #tpu.memory_space<vmem>>, vector<1x1x8x128xf32>,
    return
  }
  func.func @transform_0(%arg0: i32, %arg1: i32) -> (i32, i32, i32, i32) {
    %c0_i32 = arith.constant 0 : i32
    %c0_i32_0 = arith.constant 0 : i32
    %c0_i32_1 = arith.constant 0 : i32
    return %arg0, %c0_i32, %c0_i32_0, %arg1 : i32, i32, i32, i32
  }
  func.func @transform_1(%arg0: i32, %arg1: i32) -> (i32, i32, i32, i32) {
    %c0_i32 = arith.constant 0 : i32
    %c0_i32_0 = arith.constant 0 : i32
    %c0_i32_1 = arith.constant 0 : i32
    return %arg0, %c0_i32, %c0_i32_0, %arg1 : i32, i32, i32, i32
  }
}

</mosaic_0001>

<llo_original>
// kernel: _lambda_.1
$region0: #{_lambda_.1}
  #allocation0 [shape = 'u32[]', space=smem, size = 0x4, offset = 0x4, fixed_abs, tag = 'smem constant byte address 0x4 - core index']
  #allocation1 [shape = 'u32[144,128]{1,0:T(1,128)}', space=vmem, size = 0x12000, scoped, tag = 'internal scratch']
  %s0 = inlined_call_operand.vmem [shape: f32[2,4,16,256], index: 0, kind: input, shape index: {}]
  %s1 = inlined_call_operand.vmem [shape: f32[2,4,16,256], index: 1, kind: output, shape index: {}]
  %s2 = sld [smem:[#allocation0]]
  $region109: #{_lambda_.1} parent=0
    _
  %s4 = ssub.s32 1, %s2
  %s5 = scalar_select 0, %s4, %s2
  $region1: #{_lambda_.1} parent=0
    #allocation2 [shape = 'u8[65536]{0}', space=vmem, size = 0x10000, scoped, tag = 'input window, operand 0']
    #allocation3 [shape = 'u8[65536]{0}', space=vmem, size = 0x10000, scoped, tag = 'output window, operand 0']
    loop: start=0, step=1, limit=6
    $region2: #{_lambda_.1} parent=1 // loop_pre_header
      _
    $region3: #{_lambda_.1} parent=1 // loop_header
      %s7 = sphi 0, %s11
      %p8 = scmp.ge.s32.totalorder %s7, 6
      %s14 = sphi 0, %s26
      %s15 = sphi 0, %s22
      %s16 = sphi 0, %s14
      %s17 = sphi 0, %s15
      %s18 = sphi 0, %s16
      %s19 = sphi 0, %s17
      %s31 = sphi 0, %s33
      %s34 = sphi 0, %s31
      %s35 = sphi 0, %s34
      %s51 = sphi 0, %s35
      %s59 = sphi 0, %s61
      %s62 = sphi 0, %s59
      %s63 = sphi 0, %s62
      %s79 = sphi 0, %s63
    $region4: #{_lambda_.1} parent=1 // loop_header_branch
      %10 = sbr.rel (%p8) target = $region8
    $region5: #{_lambda_.1} parent=1 // loop_body
      %s12 = ssub.s32 %s7, 1
      %s13 = ssub.s32 %s7, 2
      %s20 = sadd.s32 1, %s15
      %p21 = scmp.ge.s32.totalorder %s20, 2
      %s22 = scalar_select %p21, 0, %s20
      %s23 = sadd.s32 1, %s14
      %s24 = scalar_select %p21, %s23, %s14
      %p25 = scmp.ge.s32.totalorder %s24, 2
      %s26 = scalar_select %p25, 0, %s24
      %s27 = ssub.s32 %s14, %s26
      %s28 = ssub.s32 %s15, %s22
      %s29 = sor.u32 %s27, %s28
      %p30 = scmp.eq.s32.totalorder %s29, 0
      %s32 = sadd.s32 %s31, 1
      %s33 = scalar_select %p30, %s31, %s32
      %p36 = pneg %p30
      %p37 = scmp.eq.s32.totalorder %s7, 3
      %p38 = por %p36, %p37
      %p39 = scmp.ne.s32.totalorder %s31, %s34
      %p40 = scmp.eq.s32.totalorder %s7, 0
      %p41 = por %p39, %p40
      %p42 = scmp.ne.s32.totalorder %s31, %s34
      %p43 = scmp.eq.s32.totalorder %s12, 3
      %p44 = por %p42, %p43
      %p45 = scmp.ne.s32.totalorder %s34, %s35
      %p46 = scmp.eq.s32.totalorder %s12, 0
      %p47 = por %p45, %p46
      %p48 = scmp.ne.s32.totalorder %s34, %s35
      %p49 = scmp.eq.s32.totalorder %s13, 3
      %p50 = por %p48, %p49
      %p52 = scmp.ne.s32.totalorder %s35, %s51
      %p53 = scmp.eq.s32.totalorder %s13, 0
      %p54 = por %p52, %p53
      %s55 = ssub.s32 %s14, %s26
      %s56 = ssub.s32 %s15, %s22
      %s57 = sor.u32 %s55, %s56
      %p58 = scmp.eq.s32.totalorder %s57, 0
      %s60 = sadd.s32 %s59, 1
      %s61 = scalar_select %p58, %s59, %s60
      %p64 = pneg %p58
      %p65 = scmp.eq.s32.totalorder %s7, 3
      %p66 = por %p64, %p65
      %p67 = scmp.ne.s32.totalorder %s59, %s62
      %p68 = scmp.eq.s32.totalorder %s7, 0
      %p69 = por %p67, %p68
      %p70 = scmp.ne.s32.totalorder %s59, %s62
      %p71 = scmp.eq.s32.totalorder %s12, 3
      %p72 = por %p70, %p71
      %p73 = scmp.ne.s32.totalorder %s62, %s63
      %p74 = scmp.eq.s32.totalorder %s12, 0
      %p75 = por %p73, %p74
      %p76 = scmp.ne.s32.totalorder %s62, %s63
      %p77 = scmp.eq.s32.totalorder %s13, 3
      %p78 = por %p76, %p77
      %p80 = scmp.ne.s32.totalorder %s63, %s79
      %p81 = scmp.eq.s32.totalorder %s13, 0
      %p82 = por %p80, %p81
      %p83 = scmp.le.s32.totalorder 1, %s7
      %p84 = scmp.lt.s32.totalorder %s7, 5
      %p85 = pnand %p83, %p84
      %p86 = pneg %p85
      // Predicated region
      $region9: #{_lambda_.1} parent=5 // pred_check
        _
      $region10: #{_lambda_.1} parent=5 // pred_check_branch
        %88 = sbr.rel (%p85) target = $region12
      $region11: #{_lambda_.1} parent=5 // pred_region
        %s89 = ssub.s32 %s7, 1
      $region12: #{_lambda_.1} parent=5 // pred_fallthru
        _
      %p90 = scmp.lt.s32.totalorder %s7, 4
      // Predicated region
      $region13: #{_lambda_.1} parent=5 // pred_check
        %p91 = pneg %p90
      $region14: #{_lambda_.1} parent=5 // pred_check_branch
        %93 = sbr.rel (%p91) target = $region16
      $region15: #{_lambda_.1} parent=5 // pred_region
        // Predicated region
        $region17: #{_lambda_.1} parent=15 // pred_check
          %p94 = pneg %p41
        $region18: #{_lambda_.1} parent=15 // pred_check_branch
          %96 = sbr.rel (%p94) target = $region20
        $region19: #{_lambda_.1} parent=15 // pred_region
          %s97 = sand.u32 %s31, 1
          %s98 = sand.u32 %s31, 1
          %s99 = smul.addr %s98, 64
          %s100 = scalar_lea.vmem [#allocation2], %s99
          %s101 = smul.addr %s14, 16
          %s102 = sadd.s32 %s15, %s101
          %s103 = smul.addr %s102, 8
          %s104 = scalar_lea.vmem %s0, %s103
          // Predicated region
          $region21: #{_lambda_.1} parent=19 // pred_check
            _
          $region22: #{_lambda_.1} parent=19 // pred_check_branch
            %106 = sbr.rel (0) target = $region24
          $region23: #{_lambda_.1} parent=19 // pred_region
            // Predicated region
            $region25: #{_lambda_.1} parent=23 // pred_check
              _
            $region26: #{_lambda_.1} parent=23 // pred_check_branch
              %108 = sbr.rel (0) target = $region28
            $region27: #{_lambda_.1} parent=23 // pred_region
              // Predicated region
              $region40: #{_lambda_.1} parent=27 // pred_check
                _
              $region41: #{_lambda_.1} parent=27 // pred_check_branch
                %137 = sbr.rel (0) target = $region43
              $region42: #{_lambda_.1} parent=27 // pred_region
                loop: start=0, step=1, limit=1
                $region44: #{_lambda_.1} parent=42 // loop_pre_header
                  _
                $region45: #{_lambda_.1} parent=42 // loop_header
                  %s139 = sphi 0, %s143
                  %p140 = scmp.ge.s32.totalorder %s139, 1
                  %s144 = sphi %s104, %s104
                  %s145 = sphi %s100, %s100
                $region46: #{_lambda_.1} parent=42 // loop_header_branch
                  %142 = sbr.rel (%p140) target = $region50
                $region47: #{_lambda_.1} parent=42 // loop_body
                  %v146 = vld [vmem:[%s144] sm:$0xff]
                  %147 = vst [vmem:[%s145] sm:$0xff] %v146
                  %v148 = vld [vmem:[%s144 + $0x10] sm:$0xff]
                  %149 = vst [vmem:[%s145 + $0x8] sm:$0xff] %v148
                  %v150 = vld [vmem:[%s144 + $0x20] sm:$0xff]
                  %151 = vst [vmem:[%s145 + $0x10] sm:$0xff] %v150
                  %v152 = vld [vmem:[%s144 + $0x30] sm:$0xff]
                  %153 = vst [vmem:[%s145 + $0x18] sm:$0xff] %v152
                  %v154 = vld [vmem:[%s144 + $0x40] sm:$0xff]
                  %155 = vst [vmem:[%s145 + $0x20] sm:$0xff] %v154
                  %v156 = vld [vmem:[%s144 + $0x50] sm:$0xff]
                  %157 = vst [vmem:[%s145 + $0x28] sm:$0xff] %v156
                  %v158 = vld [vmem:[%s144 + $0x60] sm:$0xff]
                  %159 = vst [vmem:[%s145 + $0x30] sm:$0xff] %v158
                  %v160 = vld [vmem:[%s144 + $0x70] sm:$0xff]
                  %161 = vst [vmem:[%s145 + $0x38] sm:$0xff] %v160
                $region48: #{_lambda_.1} parent=42 // loop_footer
                  %s143 = sadd.s32 1, %s139
                $region49: #{_lambda_.1} parent=42 // loop_footer_branch
                  %138 = sbr.rel target = $region45
                $region50: #{_lambda_.1} parent=42 // loop_exit
                  _
              $region43: #{_lambda_.1} parent=27 // pred_fallthru
                _
              // Predicated region
              $region51: #{_lambda_.1} parent=27 // pred_check
                _
              $region52: #{_lambda_.1} parent=27 // pred_check_branch
                %163 = sbr.rel target = $region54
              $region53: #{_lambda_.1} parent=27 // pred_region
                _
              $region54: #{_lambda_.1} parent=27 // pred_fallthru
                _
            $region28: #{_lambda_.1} parent=23 // pred_fallthru
              _
            // Predicated region
            $region29: #{_lambda_.1} parent=23 // pred_check
              _
            $region30: #{_lambda_.1} parent=23 // pred_check_branch
              %110 = sbr.rel target = $region32
            $region31: #{_lambda_.1} parent=23 // pred_region
              loop: start=0, step=1, limit=1
              $region33: #{_lambda_.1} parent=31 // loop_pre_header
                _
              $region34: #{_lambda_.1} parent=31 // loop_header
                %s113 = sphi 0, %s117
                %p114 = scmp.ge.s32.totalorder %s113, 1
                %s118 = sphi %s104, %s104
                %s119 = sphi %s100, %s100
              $region35: #{_lambda_.1} parent=31 // loop_header_branch
                %116 = sbr.rel (%p114) target = $region39
              $region36: #{_lambda_.1} parent=31 // loop_body
                %v120 = vld [vmem:[%s118] sm:$0xff]
                %121 = vst [vmem:[%s119] sm:$0xff] %v120
                %v122 = vld [vmem:[%s118 + $0x10] sm:$0xff]
                %123 = vst [vmem:[%s119 + $0x8] sm:$0xff] %v122
                %v124 = vld [vmem:[%s118 + $0x20] sm:$0xff]
                %125 = vst [vmem:[%s119 + $0x10] sm:$0xff] %v124
                %v126 = vld [vmem:[%s118 + $0x30] sm:$0xff]
                %127 = vst [vmem:[%s119 + $0x18] sm:$0xff] %v126
                %v128 = vld [vmem:[%s118 + $0x40] sm:$0xff]
                %129 = vst [vmem:[%s119 + $0x20] sm:$0xff] %v128
                %v130 = vld [vmem:[%s118 + $0x50] sm:$0xff]
                %131 = vst [vmem:[%s119 + $0x28] sm:$0xff] %v130
                %v132 = vld [vmem:[%s118 + $0x60] sm:$0xff]
                %133 = vst [vmem:[%s119 + $0x30] sm:$0xff] %v132
                %v134 = vld [vmem:[%s118 + $0x70] sm:$0xff]
                %135 = vst [vmem:[%s119 + $0x38] sm:$0xff] %v134
              $region37: #{_lambda_.1} parent=31 // loop_footer
                %s117 = sadd.s32 1, %s113
              $region38: #{_lambda_.1} parent=31 // loop_footer_branch
                %112 = sbr.rel target = $region34
              $region39: #{_lambda_.1} parent=31 // loop_exit
                _
            $region32: #{_lambda_.1} parent=23 // pred_fallthru
              _
          $region24: #{_lambda_.1} parent=19 // pred_fallthru
            _
          %164 = vnop
        $region20: #{_lambda_.1} parent=15 // pred_fallthru
          _
      $region16: #{_lambda_.1} parent=5 // pred_fallthru
        _
      %p165 = scmp.le.s32.totalorder 1, %s7
      %p166 = scmp.lt.s32.totalorder %s7, 5
      %p167 = pnand %p165, %p166
      %p168 = pneg %p167
      // Predicated region
      $region55: #{_lambda_.1} parent=5 // pred_check
        _
      $region56: #{_lambda_.1} parent=5 // pred_check_branch
        %170 = sbr.rel (%p167) target = $region58
      $region57: #{_lambda_.1} parent=5 // pred_region
        %s171 = ssub.s32 %s7, 1
        %s172 = sand.u32 %s34, 1
        %s173 = sand.u32 %s34, 1
        %s174 = smul.addr %s173, 64
        %s175 = scalar_lea.vmem [#allocation2], %s174
        // Predicated region
        $region59: #{_lambda_.1} parent=57 // pred_check
          %p176 = pneg %p47
        $region60: #{_lambda_.1} parent=57 // pred_check_branch
          %178 = sbr.rel (%p176) target = $region62
        $region61: #{_lambda_.1} parent=57 // pred_region
          _
        $region62: #{_lambda_.1} parent=57 // pred_fallthru
          _
        %s179 = sand.u32 %s34, 1
        %s180 = sand.u32 %s34, 1
        %s181 = smul.addr %s180, 64
        %s182 = scalar_lea.vmem [#allocation2], %s181
        %p183 = pneg %p47
        %p184 = pneg %p44
        %p185 = pneg %p75
        %p186 = pneg %p72
        %s187 = sand.u32 %s62, 1
        %s188 = sand.u32 %s62, 1
        %s189 = smul.addr %s188, 64
        %s190 = scalar_lea.vmem [#allocation3], %s189
        %v191 = vld [vmem:[%s175 + $0x8] sm:$0xff]
        %v192 = vld [vmem:[%s175 + $0x18] sm:$0xff]
        %v193 = vld [vmem:[%s175 + $0x28] sm:$0xff]
        %v194 = vld [vmem:[%s175 + $0x38] sm:$0xff]
        %195 = vst [vmem:[%s190 + $0x8] sm:$0xff] %v191
        %196 = vst [vmem:[%s190 + $0x18] sm:$0xff] %v192
        %197 = vst [vmem:[%s190 + $0x28] sm:$0xff] %v193
        %198 = vst [vmem:[%s190 + $0x38] sm:$0xff] %v194
        %v199 = vlaneseq
        %v200 = vshrl.u32 %v199, 7
        %vm201 = vcmp.ge.s32.totalorder %v200, 0
        %vm202 = vcmp.lt.s32.totalorder %v200, 2
        %vm203 = vmand %vm201, %vm202
        %vm204 = vcmp.ge.s32.totalorder %v200, 2
        %vm205 = vcmp.lt.s32.totalorder %v200, 4
        %vm206 = vmand %vm204, %vm205
        %vm207 = vcmp.ge.s32.totalorder %v200, 4
        %vm208 = vcmp.lt.s32.totalorder %v200, 16
        %vm209 = vmand %vm207, %vm208
        %s210 = scalar_lea.vmem %s175, 16 [#allocation2]
        %v211 = vld [vmem:[%s210] sm:$0xff]
        %v212 = vsel %vm203, 1, 0
        %vm213 = vcmp.eq.s32.totalorder %v212, 1
        %v214 = vsel %vm213, %v211, 0.0
        %v215 = vld [vmem:[%s175] sm:$0xff]
        %v216 = vsel %vm209, 1, 0
        %vm217 = vcmp.eq.s32.totalorder %v216, 1
        %v218 = vsel %vm217, %v215, %v214
        %219 = vst [vmem:[%s190] sm:$0xff] %v218
        %s220 = scalar_lea.vmem %s175, 32 [#allocation2]
        %v221 = vld [vmem:[%s220] sm:$0xff]
        %v222 = vsel %vm213, %v221, 0.0
        %v223 = vld [vmem:[%s175] sm:$0xff]
        %v224 = vsel %vm206, 1, 0
        %vm225 = vcmp.eq.s32.totalorder %v224, 1
        %v226 = vsel %vm225, %v223, %v222
        %v227 = vld [vmem:[%s210] sm:$0xff]
        %v228 = vsel %vm217, %v227, %v226
        %s229 = scalar_lea.vmem %s190, 16 [#allocation3]
        %230 = vst [vmem:[%s229] sm:$0xff] %v228
        %s231 = scalar_lea.vmem %s175, 48 [#allocation2]
        %v232 = vld [vmem:[%s231] sm:$0xff]
        %v233 = vsel %vm213, %v232, 0.0
        %v234 = vld [vmem:[%s210] sm:$0xff]
        %v235 = vsel %vm225, %v234, %v233
        %v236 = vld [vmem:[%s220] sm:$0xff]
        %v237 = vsel %vm217, %v236, %v235
        %s238 = scalar_lea.vmem %s190, 32 [#allocation3]
        %239 = vst [vmem:[%s238] sm:$0xff] %v237
        %v240 = vld [vmem:[%s220] sm:$0xff]
        %v241 = vsel %vm225, %v240, 0.0
        %v242 = vld [vmem:[%s231] sm:$0xff]
        %v243 = vsel %vm217, %v242, %v241
        %s244 = scalar_lea.vmem %s190, 48 [#allocation3]
        %245 = vst [vmem:[%s244] sm:$0xff] %v243
        %s246 = sand.u32 %s62, 1
        %s247 = sand.u32 %s62, 1
        %s248 = smul.addr %s247, 64
        %s249 = scalar_lea.vmem [#allocation3], %s248
        // Predicated region
        $region63: #{_lambda_.1} parent=57 // pred_check
          %p250 = pneg %p72
        $region64: #{_lambda_.1} parent=57 // pred_check_branch
          %252 = sbr.rel (%p250) target = $region66
        $region65: #{_lambda_.1} parent=57 // pred_region
          %s253 = smul.addr %s16, 16
          %s254 = sadd.s32 %s17, %s253
          %s255 = smul.addr %s254, 8
          %s256 = scalar_lea.vmem %s1, %s255
          // Predicated region
          $region67: #{_lambda_.1} parent=65 // pred_check
            _
          $region68: #{_lambda_.1} parent=65 // pred_check_branch
            %258 = sbr.rel (0) target = $region70
          $region69: #{_lambda_.1} parent=65 // pred_region
            // Predicated region
            $region71: #{_lambda_.1} parent=69 // pred_check
              _
            $region72: #{_lambda_.1} parent=69 // pred_check_branch
              %260 = sbr.rel (0) target = $region74
            $region73: #{_lambda_.1} parent=69 // pred_region
              // Predicated region
              $region86: #{_lambda_.1} parent=73 // pred_check
                _
              $region87: #{_lambda_.1} parent=73 // pred_check_branch
                %289 = sbr.rel (0) target = $region89
              $region88: #{_lambda_.1} parent=73 // pred_region
                loop: start=0, step=1, limit=1
                $region90: #{_lambda_.1} parent=88 // loop_pre_header
                  _
                $region91: #{_lambda_.1} parent=88 // loop_header
                  %s291 = sphi 0, %s295
                  %p292 = scmp.ge.s32.totalorder %s291, 1
                  %s296 = sphi %s249, %s249
                  %s297 = sphi %s256, %s256
                $region92: #{_lambda_.1} parent=88 // loop_header_branch
                  %294 = sbr.rel (%p292) target = $region96
                $region93: #{_lambda_.1} parent=88 // loop_body
                  %v298 = vld [vmem:[%s296] sm:$0xff]
                  %299 = vst [vmem:[%s297] sm:$0xff] %v298
                  %v300 = vld [vmem:[%s296 + $0x8] sm:$0xff]
                  %301 = vst [vmem:[%s297 + $0x10] sm:$0xff] %v300
                  %v302 = vld [vmem:[%s296 + $0x10] sm:$0xff]
                  %303 = vst [vmem:[%s297 + $0x20] sm:$0xff] %v302
                  %v304 = vld [vmem:[%s296 + $0x18] sm:$0xff]
                  %305 = vst [vmem:[%s297 + $0x30] sm:$0xff] %v304
                  %v306 = vld [vmem:[%s296 + $0x20] sm:$0xff]
                  %307 = vst [vmem:[%s297 + $0x40] sm:$0xff] %v306
                  %v308 = vld [vmem:[%s296 + $0x28] sm:$0xff]
                  %309 = vst [vmem:[%s297 + $0x50] sm:$0xff] %v308
                  %v310 = vld [vmem:[%s296 + $0x30] sm:$0xff]
                  %311 = vst [vmem:[%s297 + $0x60] sm:$0xff] %v310
                  %v312 = vld [vmem:[%s296 + $0x38] sm:$0xff]
                  %313 = vst [vmem:[%s297 + $0x70] sm:$0xff] %v312
                $region94: #{_lambda_.1} parent=88 // loop_footer
                  %s295 = sadd.s32 1, %s291
                $region95: #{_lambda_.1} parent=88 // loop_footer_branch
                  %290 = sbr.rel target = $region91
                $region96: #{_lambda_.1} parent=88 // loop_exit
                  _
              $region89: #{_lambda_.1} parent=73 // pred_fallthru
                _
              // Predicated region
              $region97: #{_lambda_.1} parent=73 // pred_check
                _
              $region98: #{_lambda_.1} parent=73 // pred_check_branch
                %315 = sbr.rel target = $region100
              $region99: #{_lambda_.1} parent=73 // pred_region
                _
              $region100: #{_lambda_.1} parent=73 // pred_fallthru
                _
            $region74: #{_lambda_.1} parent=69 // pred_fallthru
              _
            // Predicated region
            $region75: #{_lambda_.1} parent=69 // pred_check
              _
            $region76: #{_lambda_.1} parent=69 // pred_check_branch
              %262 = sbr.rel target = $region78
            $region77: #{_lambda_.1} parent=69 // pred_region
              loop: start=0, step=1, limit=1
              $region79: #{_lambda_.1} parent=77 // loop_pre_header
                _
              $region80: #{_lambda_.1} parent=77 // loop_header
                %s265 = sphi 0, %s269
                %p266 = scmp.ge.s32.totalorder %s265, 1
                %s270 = sphi %s249, %s249
                %s271 = sphi %s256, %s256
              $region81: #{_lambda_.1} parent=77 // loop_header_branch
                %268 = sbr.rel (%p266) target = $region85
              $region82: #{_lambda_.1} parent=77 // loop_body
                %v272 = vld [vmem:[%s270] sm:$0xff]
                %273 = vst [vmem:[%s271] sm:$0xff] %v272
                %v274 = vld [vmem:[%s270 + $0x8] sm:$0xff]
                %275 = vst [vmem:[%s271 + $0x10] sm:$0xff] %v274
                %v276 = vld [vmem:[%s270 + $0x10] sm:$0xff]
                %277 = vst [vmem:[%s271 + $0x20] sm:$0xff] %v276
                %v278 = vld [vmem:[%s270 + $0x18] sm:$0xff]
                %279 = vst [vmem:[%s271 + $0x30] sm:$0xff] %v278
                %v280 = vld [vmem:[%s270 + $0x20] sm:$0xff]
                %281 = vst [vmem:[%s271 + $0x40] sm:$0xff] %v280
                %v282 = vld [vmem:[%s270 + $0x28] sm:$0xff]
                %283 = vst [vmem:[%s271 + $0x50] sm:$0xff] %v282
                %v284 = vld [vmem:[%s270 + $0x30] sm:$0xff]
                %285 = vst [vmem:[%s271 + $0x60] sm:$0xff] %v284
                %v286 = vld [vmem:[%s270 + $0x38] sm:$0xff]
                %287 = vst [vmem:[%s271 + $0x70] sm:$0xff] %v286
              $region83: #{_lambda_.1} parent=77 // loop_footer
                %s269 = sadd.s32 1, %s265
              $region84: #{_lambda_.1} parent=77 // loop_footer_branch
                %264 = sbr.rel target = $region80
              $region85: #{_lambda_.1} parent=77 // loop_exit
                _
            $region78: #{_lambda_.1} parent=69 // pred_fallthru
              _
          $region70: #{_lambda_.1} parent=65 // pred_fallthru
            _
          %316 = vnop
        $region66: #{_lambda_.1} parent=57 // pred_fallthru
          _
      $region58: #{_lambda_.1} parent=5 // pred_fallthru
        _
      %p317 = scmp.le.s32.totalorder 2, %s7
      // Predicated region
      $region101: #{_lambda_.1} parent=5 // pred_check
        %p318 = pneg %p317
      $region102: #{_lambda_.1} parent=5 // pred_check_branch
        %320 = sbr.rel (%p318) target = $region104
      $region103: #{_lambda_.1} parent=5 // pred_region
        %s321 = ssub.s32 %s7, 2
        // Predicated region
        $region105: #{_lambda_.1} parent=103 // pred_check
          %p322 = pneg %p78
        $region106: #{_lambda_.1} parent=103 // pred_check_branch
          %324 = sbr.rel (%p322) target = $region108
        $region107: #{_lambda_.1} parent=103 // pred_region
          %s325 = sand.u32 %s63, 1
          %s326 = sand.u32 %s63, 1
          %s327 = smul.addr %s326, 64
          %s328 = scalar_lea.vmem [#allocation3], %s327
        $region108: #{_lambda_.1} parent=103 // pred_fallthru
          _
      $region104: #{_lambda_.1} parent=5 // pred_fallthru
        _
    $region6: #{_lambda_.1} parent=1 // loop_footer
      %s11 = sadd.s32 1, %s7
    $region7: #{_lambda_.1} parent=1 // loop_footer_branch
      %6 = sbr.rel target = $region3
    $region8: #{_lambda_.1} parent=1 // loop_exit
      _

</llo_original>
